<compile_context>
chip_gen: v5e
topology: v5e:2x2
jax: 0.10.0
libtpu: 0.0.40
codegen_flags: <defaults>
</compile_context>

<pallas_src>
import math

import jax
import jax.numpy as jnp
import numpy as np
from jax.experimental import pallas as pl
from jax.experimental.pallas import tpu as pltpu

# ----------------------------- problem sizes --------------------------------
B = 2            # batch
S_Q = 8          # query sequence length
S_KV = 8         # key/value sequence length
D_MODEL = 32
N_HEADS = 4
D_K = D_MODEL // N_HEADS
NEG_INF = -1.0e9  # matches torch masked_fill_(mask == 0, -1e9)


# ------------------------------- Pallas kernel -------------------------------
def mha_kernel(qkv_ref, bias_ref, w_qkv_ref, wo_ref, bo_ref, out_ref):
    """Single-invocation multi-head attention forward.

    qkv_ref  : (3, B, S, D+1) bf16  -- q/k/v stacked; last column is 1.0 (folds biases)
    bias_ref : (B*H, Sq, Sk)  f32   -- additive mask bias (0 or -1e9), index g = b*H + h
    w_qkv_ref: (3*B*H, D+1, DK) bf16 -- per-(qkv, batch, head) augmented projection weights
    wo_ref   : (B*H, DK, D)   bf16  -- per-(batch, head) output-projection weight blocks
    bo_ref   : (1, D)         f32   -- output-projection bias
    out_ref  : (B*S, D)       f32   -- lane-dense 2-D output slab
    """
    three, b, s, dp = qkv_ref.shape
    g = bias_ref.shape[0]              # g = B * H
    n_heads = g // b
    dk = w_qkv_ref.shape[-1]
    d = wo_ref.shape[-1]

    # ---- fused Q/K/V projections: one head-batched MXU pass, biases folded in ----
    x = qkv_ref[...].reshape(three * b, s, dp)                       # (3B, S, D+1)
    x = jnp.broadcast_to(x[:, None, :, :], (three * b, n_heads, s, dp))
    x = x.reshape(three * g, s, dp)                                  # idx = (qkv, b, h)
    proj = jnp.einsum('gsd,gde->gse', x, w_qkv_ref[...],
                      preferred_element_type=jnp.float32)
    proj = proj.astype(jnp.bfloat16)                                 # (3G, S, DK)
    qh, kh, vh = proj[0:g], proj[g:2 * g], proj[2 * g:3 * g]         # each (G, S, DK)

    # ---- head-batched attention scores + masked softmax (f32) ----
    scores = jnp.einsum('gqe,gke->gqk', qh, kh,
                        preferred_element_type=jnp.float32) * (1.0 / math.sqrt(dk))
    scores = scores + bias_ref[...]                                  # additive mask bias
    scores = scores - jnp.max(scores, axis=-1, keepdims=True)
    p = jnp.exp(scores)
    p = p * pl.reciprocal(jnp.sum(p, axis=-1, keepdims=True), approx=True)

    ctx = jnp.einsum('gqk,gke->gqe', p.astype(jnp.bfloat16), vh,
                     preferred_element_type=jnp.float32)             # (G, Sq, DK)

    # ---- output projection: head-batched matmul + sum over heads (no lane concat) ----
    partial = jnp.einsum('gqe,gen->gqn', ctx.astype(jnp.bfloat16), wo_ref[...],
                         preferred_element_type=jnp.float32)         # (G, Sq, D)
    part = partial.reshape(b, n_heads, s, d)                         # leading split only
    out = part[:, 0]
    for i in range(1, n_heads):
        out = out + part[:, i]                                       # (B, Sq, D)
    out_ref[...] = out.reshape(b * s, d) + bo_ref[...]


# ------------------------------- host wrapper --------------------------------
def mha_forward(q, k, v, mask, w_qkv_g, wo_g, bo):
    Bq, Sq, D = q.shape
    _, Sk, _ = k.shape
    assert Sq == Sk, "packed-QKV fast path assumes equal q/k/v sequence lengths"
    H = N_HEADS

    # One input DMA for q/k/v; the trailing ones column makes x @ W_aug == x @ W + b.
    qkv = jnp.stack([q, k, v], axis=0)                               # (3, B, S, D)
    ones = jnp.ones((3, Bq, Sq, 1), qkv.dtype)
    qkv_aug = jnp.concatenate([qkv, ones], axis=-1).astype(jnp.bfloat16)

    # Additive mask bias (masked_fill(mask==0, -1e9) semantics), pre-tiled to the
    # kernel's (b*H + h) head-batch ordering.
    mask3 = jnp.broadcast_to(mask, (Bq, 1, Sq, Sk)).reshape(Bq, Sq, Sk)
    attn_bias = jnp.where(mask3 == 0, NEG_INF, 0.0).astype(jnp.float32)
    attn_bias = jnp.repeat(attn_bias, H, axis=0)                     # (B*H, Sq, Sk)

    vmem = pltpu.MemorySpace.VMEM
    out2d = pl.pallas_call(
        mha_kernel,
        out_shape=jax.ShapeDtypeStruct((Bq * Sq, D), jnp.float32),
        # No grid: one invocation, everything resident in VMEM, params DMA'd once.
        in_specs=[pl.BlockSpec(memory_space=vmem)] * 5,
        out_specs=pl.BlockSpec(memory_space=vmem),
    )(qkv_aug, attn_bias, w_qkv_g, wo_g, bo)
    return out2d.reshape(Bq, Sq, D)


# ------------------------------ parameter init -------------------------------
def init_params(key):
    keys = jax.random.split(key, 8)
    bound = 1.0 / math.sqrt(D_MODEL)

    def linear(kw, kb):
        w = jax.random.uniform(kw, (D_MODEL, D_MODEL), jnp.float32, -bound, bound)
        b = jax.random.uniform(kb, (1, D_MODEL), jnp.float32, -bound, bound)
        return w, b

    wq, bq = linear(keys[0], keys[1])
    wk, bk = linear(keys[2], keys[3])
    wv, bv = linear(keys[4], keys[5])
    wo, bo = linear(keys[6], keys[7])
    return (wq, bq, wk, bk, wv, bv, wo, bo)


def pack_params(params):
    """One-time packing into head-major, bf16, MXU/DMA-friendly slabs."""
    wq, bq, wk, bk, wv, bv, wo, bo = params
    H, DK, D = N_HEADS, D_K, D_MODEL

    def per_head_aug(w, bias):                       # (D, D), (1, D) -> (H, D+1, DK)
        w_aug = jnp.concatenate([w, bias], axis=0)   # row D carries the bias
        return jnp.transpose(w_aug.reshape(D + 1, H, DK), (1, 0, 2))

    w_qkv = jnp.stack([per_head_aug(wq, bq),
                       per_head_aug(wk, bk),
                       per_head_aug(wv, bv)], axis=0)             # (3, H, D+1, DK)
    # Replicate over batch so the kernel's leading-batch einsum needs no in-kernel
    # weight broadcast; flattened ordering is (qkv, batch, head).
    w_qkv_g = jnp.broadcast_to(w_qkv[:, None], (3, B, H, D + 1, DK))
    w_qkv_g = w_qkv_g.reshape(3 * B * H, D + 1, DK).astype(jnp.bfloat16)

    wo_heads = wo.reshape(H, DK, D)                               # rows h*DK:(h+1)*DK
    wo_g = jnp.broadcast_to(wo_heads[None], (B, H, DK, D))
    wo_g = wo_g.reshape(B * H, DK, D).astype(jnp.bfloat16)
    return w_qkv_g, wo_g, bo.astype(jnp.float32)


# --------------------------------- reference ---------------------------------
def torch_style_reference(q, k, v, mask, params):
    """Independent plain-JAX reimplementation of the intended PyTorch forward."""
    wq, bq, wk, bk, wv, bv, wo, bo = params
    query = jnp.matmul(q, wq) + bq
    key = jnp.matmul(k, wk) + bk
    value = jnp.matmul(v, wv) + bv

    def heads(t):
        b, s, _ = t.shape
        return t.reshape(b, s, N_HEADS, D_K).transpose(0, 2, 1, 3)   # (B, H, S, DK)

    qh, kh, vh = heads(query), heads(key), heads(value)
    scores = jnp.matmul(qh, jnp.swapaxes(kh, -2, -1)) / math.sqrt(D_K)  # (B, H, Sq, Sk)
    scores = jnp.where(mask == 0.0, NEG_INF, scores)   # (B,1,Sq,Sk) broadcasts over heads
    attn = jax.nn.softmax(scores, axis=-1)
    x = jnp.matmul(attn, vh)                            # (B, H, Sq, DK)
    x = x.transpose(0, 2, 1, 3).reshape(q.shape[0], -1, N_HEADS * D_K)
    return jnp.matmul(x, wo) + bo


# ------------------------------------ main ------------------------------------
if __name__ == "__main__":
    key = jax.random.PRNGKey(0)
    kq, kk, kv, kp = jax.random.split(key, 4)

    q = jax.random.normal(kq, (B, S_Q, D_MODEL), jnp.float32)
    k = jax.random.normal(kk, (B, S_KV, D_MODEL), jnp.float32)
    v = jax.random.normal(kv, (B, S_KV, D_MODEL), jnp.float32)
    # causal mask (0 => masked out), torch-style (B, 1, Sq, Sk)
    mask = jnp.broadcast_to(
        jnp.tril(jnp.ones((S_Q, S_KV), jnp.float32))[None, None], (B, 1, S_Q, S_KV))

    params = init_params(kp)
    w_qkv_g, wo_g, bo = pack_params(params)

    out = jax.block_until_ready(
        jax.jit(mha_forward)(q, k, v, mask, w_qkv_g, wo_g, bo))

    # High-precision independent reference (kernel runs bf16 MXU passes).
    with jax.default_matmul_precision("highest"):
        ref = jax.block_until_ready(torch_style_reference(q, k, v, mask, params))

    np.testing.assert_allclose(np.asarray(out), np.asarray(ref), rtol=1e-2, atol=1e-2)
    print("KERNEL_OK")
</pallas_src>

<mosaic_0001>
module attributes {stable_mosaic.version = 11 : i64} {
  func.func @mha_kernel(%arg0: memref<3x2x8x33xbf16, #tpu.memory_space<vmem>>, %arg1: memref<8x8x8xf32, #tpu.memory_space<vmem>>, %arg2: memref<24x33x8xbf16, #tpu.memory_space<vmem>>, %arg3: memref<8x8x32xbf16, #tpu.memory_space<vmem>>, %arg4: memref<1x32xf32, #tpu.memory_space<vmem>>, %arg5: memref<16x32xf32, #tpu.memory_space<vmem>>) attributes {dimension_semantics = [], scalar_prefetch = 0 : i64, scratch_operands = 0 : i64, tpu.core_type = #tpu.core_type<tc>} {
    %c0 = arith.constant 0 : index
    %c0_0 = arith.constant 0 : index
    %c0_1 = arith.constant 0 : index
    %c0_2 = arith.constant 0 : index
    %0 = vector.load %arg0[%c0, %c0_0, %c0_1, %c0_2] : memref<3x2x8x33xbf16, #tpu.memory_space<vmem>>, vector<3x2x8x33xbf16>
    %1 = vector.shape_cast %0 : vector<3x2x8x33xbf16> to vector<6x8x33xbf16>
    %2 = vector.shape_cast %1 : vector<6x8x33xbf16> to vector<6x1x8x33xbf16>
    %3 = vector.shape_cast %2 : vector<6x1x8x33xbf16> to vector<6x1x8x33xbf16>
    %4 = vector.broadcast %3 : vector<6x1x8x33xbf16> to vector<6x4x8x33xbf16>
    %5 = vector.shape_cast %4 : vector<6x4x8x33xbf16> to vector<24x8x33xbf16>
    %c0_3 = arith.constant 0 : index
    %c0_4 = arith.constant 0 : index
    %c0_5 = arith.constant 0 : index
    %6 = vector.load %arg2[%c0_3, %c0_4, %c0_5] : memref<24x33x8xbf16, #tpu.memory_space<vmem>>, vector<24x33x8xbf16>
    "tpu.trace_start"() <{level = 10 : i32, message = "gsd,gde->gse"}> : () -> ()
    %cst = arith.constant dense<0.000000e+00> : vector<24x8x8xf32>
    %7 = tpu.matmul %5, %6, %cst {dimension_numbers = #tpu.dot_dimension_numbers<[2], [1], [1], [2], [0, 0, 0, 1, 1, 2], [0], [0]>} : vector<24x8x33xbf16>, vector<24x33x8xbf16>, vector<24x8x8xf32> -> vector<24x8x8xf32>
    "tpu.trace_stop"() : () -> ()
    %8 = arith.truncf %7 : vector<24x8x8xf32> to vector<24x8x8xbf16>
    %9 = vector.extract_strided_slice %8 {offsets = [0, 0, 0], sizes = [8, 8, 8], strides = [1, 1, 1]} : vector<24x8x8xbf16> to vector<8x8x8xbf16>
    %10 = vector.extract_strided_slice %8 {offsets = [8, 0, 0], sizes = [8, 8, 8], strides = [1, 1, 1]} : vector<24x8x8xbf16> to vector<8x8x8xbf16>
    %11 = vector.extract_strided_slice %8 {offsets = [16, 0, 0], sizes = [8, 8, 8], strides = [1, 1, 1]} : vector<24x8x8xbf16> to vector<8x8x8xbf16>
    "tpu.trace_start"() <{level = 10 : i32, message = "gqe,gke->gqk"}> : () -> ()
    %cst_6 = arith.constant dense<0.000000e+00> : vector<8x8x8xf32>
    %12 = tpu.matmul %9, %10, %cst_6 {dimension_numbers = #tpu.dot_dimension_numbers<[2], [2], [1], [1], [0, 0, 0, 1, 1, 1], [0], [0]>} : vector<8x8x8xbf16>, vector<8x8x8xbf16>, vector<8x8x8xf32> -> vector<8x8x8xf32>
    "tpu.trace_stop"() : () -> ()
    %cst_7 = arith.constant 0.353553385 : f32
    %13 = vector.broadcast %cst_7 : f32 to vector<8x8x8xf32>
    %14 = arith.mulf %12, %13 : vector<8x8x8xf32>
    %c0_8 = arith.constant 0 : index
    %c0_9 = arith.constant 0 : index
    %c0_10 = arith.constant 0 : index
    %15 = vector.load %arg1[%c0_8, %c0_9, %c0_10] : memref<8x8x8xf32, #tpu.memory_space<vmem>>, vector<8x8x8xf32>
    %16 = arith.addf %14, %15 : vector<8x8x8xf32>
    %cst_11 = arith.constant dense<0xFF800000> : vector<8x8xf32>
    %17 = vector.multi_reduction <maximumf>, %16, %cst_11 [2] : vector<8x8x8xf32> to vector<8x8xf32>
    %18 = vector.shape_cast %17 : vector<8x8xf32> to vector<8x8x1xf32>
    %19 = vector.broadcast %18 : vector<8x8x1xf32> to vector<8x8x8xf32>
    %20 = arith.subf %16, %19 : vector<8x8x8xf32>
    %21 = math.exp %20 : vector<8x8x8xf32>
    %cst_12 = arith.constant dense<0.000000e+00> : vector<8x8xf32>
    %22 = vector.multi_reduction <add>, %21, %cst_12 [2] : vector<8x8x8xf32> to vector<8x8xf32>
    %23 = vector.shape_cast %22 : vector<8x8xf32> to vector<8x8x1xf32>
    %24 = tpu.reciprocal %23 {approx = true} : vector<8x8x1xf32> -> vector<8x8x1xf32>
    %25 = vector.broadcast %24 : vector<8x8x1xf32> to vector<8x8x8xf32>
    %26 = arith.mulf %21, %25 : vector<8x8x8xf32>
    %27 = arith.truncf %26 : vector<8x8x8xf32> to vector<8x8x8xbf16>
    "tpu.trace_start"() <{level = 10 : i32, message = "gqk,gke->gqe"}> : () -> ()
    %cst_13 = arith.constant dense<0.000000e+00> : vector<8x8x8xf32>
    %28 = tpu.matmul %27, %11, %cst_13 {dimension_numbers = #tpu.dot_dimension_numbers<[2], [1], [1], [2], [0, 0, 0, 1, 1, 2], [0], [0]>} : vector<8x8x8xbf16>, vector<8x8x8xbf16>, vector<8x8x8xf32> -> vector<8x8x8xf32>
    "tpu.trace_stop"() : () -> ()
    %29 = arith.truncf %28 : vector<8x8x8xf32> to vector<8x8x8xbf16>
    %c0_14 = arith.constant 0 : index
    %c0_15 = arith.constant 0 : index
    %c0_16 = arith.constant 0 : index
    %30 = vector.load %arg3[%c0_14, %c0_15, %c0_16] : memref<8x8x32xbf16, #tpu.memory_space<vmem>>, vector<8x8x32xbf16>
    "tpu.trace_start"() <{level = 10 : i32, message = "gqe,gen->gqn"}> : () -> ()
    %cst_17 = arith.constant dense<0.000000e+00> : vector<8x8x32xf32>
    %31 = tpu.matmul %29, %30, %cst_17 {dimension_numbers = #tpu.dot_dimension_numbers<[2], [1], [1], [2], [0, 0, 0, 1, 1, 2], [0], [0]>} : vector<8x8x8xbf16>, vector<8x8x32xbf16>, vector<8x8x32xf32> -> vector<8x8x32xf32>
    "tpu.trace_stop"() : () -> ()
    %32 = vector.shape_cast %31 : vector<8x8x32xf32> to vector<2x4x8x32xf32>
    %33 = vector.extract_strided_slice %32 {offsets = [0, 0, 0, 0], sizes = [2, 1, 8, 32], strides = [1, 1, 1, 1]} : vector<2x4x8x32xf32> to vector<2x1x8x32xf32>
    %34 = vector.shape_cast %33 : vector<2x1x8x32xf32> to vector<2x8x32xf32>
    %35 = vector.extract_strided_slice %32 {offsets = [0, 1, 0, 0], sizes = [2, 1, 8, 32], strides = [1, 1, 1, 1]} : vector<2x4x8x32xf32> to vector<2x1x8x32xf32>
    %36 = vector.shape_cast %35 : vector<2x1x8x32xf32> to vector<2x8x32xf32>
    %37 = arith.addf %34, %36 : vector<2x8x32xf32>
    %38 = vector.extract_strided_slice %32 {offsets = [0, 2, 0, 0], sizes = [2, 1, 8, 32], strides = [1, 1, 1, 1]} : vector<2x4x8x32xf32> to vector<2x1x8x32xf32>
    %39 = vector.shape_cast %38 : vector<2x1x8x32xf32> to vector<2x8x32xf32>
    %40 = arith.addf %37, %39 : vector<2x8x32xf32>
    %41 = vector.extract_strided_slice %32 {offsets = [0, 3, 0, 0], sizes = [2, 1, 8, 32], strides = [1, 1, 1, 1]} : vector<2x4x8x32xf32> to vector<2x1x8x32xf32>
    %42 = vector.shape_cast %41 : vector<2x1x8x32xf32> to vector<2x8x32xf32>
    %43 = arith.addf %40, %42 : vector<2x8x32xf32>
    %44 = vector.shape_cast %43 : vector<2x8x32xf32> to vector<16x32xf32>
    %c0_18 = arith.constant 0 : index
    %c0_19 = arith.constant 0 : index
    %45 = vector.load %arg4[%c0_18, %c0_19] : memref<1x32xf32, #tpu.memory_space<vmem>>, vector<1x32xf32>
    %46 = vector.broadcast %45 : vector<1x32xf32> to vector<16x32xf32>
    %47 = arith.addf %44, %46 : vector<16x32xf32>
    %c0_20 = arith.constant 0 : index
    %c0_21 = arith.constant 0 : index
    %48 = vector.load %arg5[%c0_20, %c0_21] : memref<16x32xf32, #tpu.memory_space<vmem>>, vector<16x32xf32>
    tpu.vector_store %arg5[%c0_20, %c0_21], %47 {strides = array<i32>} : memref<16x32xf32, #tpu.memory_space<vmem>>, vector<16x32xf32>,
    return
  }
}

</mosaic_0001>

<llo_original>
// kernel: mha_forward.1
$region0: #{mha_forward.1}
  #allocation0 [shape = 'u32[]', space=smem, size = 0x4, offset = 0x4, fixed_abs, tag = 'smem constant byte address 0x4 - core index']
  #allocation1 [shape = 'u32[72,128]{1,0:T(1,128)}', space=vmem, size = 0x9000, scoped, tag = 'internal scratch']
  %s0 = inlined_call_operand.vmem [shape: bf16[3,2,8,33], index: 0, kind: input, shape index: {}]
  %s1 = inlined_call_operand.vmem [shape: f32[8,8,8], index: 1, kind: input, shape index: {}]
  %s2 = inlined_call_operand.vmem [shape: bf16[24,33,8], index: 2, kind: input, shape index: {}]
  %s3 = inlined_call_operand.vmem [shape: bf16[8,8,32], index: 3, kind: input, shape index: {}]
  %s4 = inlined_call_operand.vmem [shape: f32[1,32], index: 4, kind: input, shape index: {}]
  %s5 = inlined_call_operand.hbm [shape: f32[16,32], index: 5, kind: output, shape index: {}]
  %s6 = sld [smem:[#allocation0]]
  $region30: #{mha_forward.1} parent=0
    _
  %s8 = ssub.s32 1, %s6
  %s9 = scalar_select 0, %s8, %s6
  $region1: #{mha_forward.1} parent=0
    #allocation2 [shape = 'u8[8192]{0}', space=vmem, size = 0x2000, scoped, tag = 'output window, operand 0, single buffered']
    #allocation3 [shape = 's32[1]{0}', space=sflag, size = 0x4, scoped, tag = 'scoped memory for mha_forward.1']
    %10 = vsyncpa [#allocation3], 0
    // Predicated region
    $region2: #{mha_forward.1} parent=1 // pred_check
      _
    $region3: #{mha_forward.1} parent=1 // pred_check_branch
      %12 = sbr.rel (0) target = $region5
    $region4: #{mha_forward.1} parent=1 // pred_region
      _
    $region5: #{mha_forward.1} parent=1 // pred_fallthru
      _
    // Predicated region
    $region6: #{mha_forward.1} parent=1 // pred_check
      _
    $region7: #{mha_forward.1} parent=1 // pred_check_branch
      %14 = sbr.rel (0) target = $region9
    $region8: #{mha_forward.1} parent=1 // pred_region
      _
    $region9: #{mha_forward.1} parent=1 // pred_fallthru
      _
    // Predicated region
    $region10: #{mha_forward.1} parent=1 // pred_check
      _
    $region11: #{mha_forward.1} parent=1 // pred_check_branch
      %16 = sbr.rel (0) target = $region13
    $region12: #{mha_forward.1} parent=1 // pred_region
      _
    $region13: #{mha_forward.1} parent=1 // pred_fallthru
      _
    // Predicated region
    $region14: #{mha_forward.1} parent=1 // pred_check
      _
    $region15: #{mha_forward.1} parent=1 // pred_check_branch
      %18 = sbr.rel (0) target = $region17
    $region16: #{mha_forward.1} parent=1 // pred_region
      _
    $region17: #{mha_forward.1} parent=1 // pred_fallthru
      _
    // Predicated region
    $region18: #{mha_forward.1} parent=1 // pred_check
      _
    $region19: #{mha_forward.1} parent=1 // pred_check_branch
      %20 = sbr.rel (0) target = $region21
    $region20: #{mha_forward.1} parent=1 // pred_region
      _
    $region21: #{mha_forward.1} parent=1 // pred_fallthru
      _
    %v22 = vld [vmem:[%s0] sm:$0xf]
    %v23 = vld [vmem:[%s0 + $0x4] sm:$0xf]
    %v24 = vld [vmem:[%s0 + $0x8] sm:$0xf]
    %v25 = vld [vmem:[%s0 + $0xc] sm:$0xf]
    %v26 = vld [vmem:[%s0 + $0x10] sm:$0xf]
    %v27 = vld [vmem:[%s0 + $0x14] sm:$0xf]
    %v28 = vld [vmem:[%s2] sm:$0xf]
    %v29 = vld [vmem:[%s2 + $0x4] sm:$0xf]
    %v30 = vld [vmem:[%s2 + $0x8] sm:$0xf]
    %v31 = vld [vmem:[%s2 + $0xc] sm:$0xf]
    %v32 = vld [vmem:[%s2 + $0x10] sm:$0x1]
    %v33 = vld [vmem:[%s2 + $0x14] sm:$0xf]
    %v34 = vld [vmem:[%s2 + $0x18] sm:$0xf]
    %v35 = vld [vmem:[%s2 + $0x1c] sm:$0xf]
    %v36 = vld [vmem:[%s2 + $0x20] sm:$0xf]
    %v37 = vld [vmem:[%s2 + $0x24] sm:$0x1]
    %v38 = vld [vmem:[%s2 + $0x28] sm:$0xf]
    %v39 = vld [vmem:[%s2 + $0x2c] sm:$0xf]
    %v40 = vld [vmem:[%s2 + $0x30] sm:$0xf]
    %v41 = vld [vmem:[%s2 + $0x34] sm:$0xf]
    %v42 = vld [vmem:[%s2 + $0x38] sm:$0x1]
    %v43 = vld [vmem:[%s2 + $0x3c] sm:$0xf]
    %v44 = vld [vmem:[%s2 + $0x40] sm:$0xf]
    %v45 = vld [vmem:[%s2 + $0x44] sm:$0xf]
    %v46 = vld [vmem:[%s2 + $0x48] sm:$0xf]
    %v47 = vld [vmem:[%s2 + $0x4c] sm:$0x1]
    %v48 = vld [vmem:[%s2 + $0x50] sm:$0xf]
    %v49 = vld [vmem:[%s2 + $0x54] sm:$0xf]
    %v50 = vld [vmem:[%s2 + $0x58] sm:$0xf]
    %v51 = vld [vmem:[%s2 + $0x5c] sm:$0xf]
    %v52 = vld [vmem:[%s2 + $0x60] sm:$0x1]
    %v53 = vld [vmem:[%s2 + $0x64] sm:$0xf]
    %v54 = vld [vmem:[%s2 + $0x68] sm:$0xf]
    %v55 = vld [vmem:[%s2 + $0x6c] sm:$0xf]
    %v56 = vld [vmem:[%s2 + $0x70] sm:$0xf]
    %v57 = vld [vmem:[%s2 + $0x74] sm:$0x1]
    %v58 = vld [vmem:[%s2 + $0x78] sm:$0xf]
    %v59 = vld [vmem:[%s2 + $0x7c] sm:$0xf]
    %v60 = vld [vmem:[%s2 + $0x80] sm:$0xf]
    %v61 = vld [vmem:[%s2 + $0x84] sm:$0xf]
    %v62 = vld [vmem:[%s2 + $0x88] sm:$0x1]
    %v63 = vld [vmem:[%s2 + $0x8c] sm:$0xf]
    %v64 = vld [vmem:[%s2 + $0x90] sm:$0xf]
    %v65 = vld [vmem:[%s2 + $0x94] sm:$0xf]
    %v66 = vld [vmem:[%s2 + $0x98] sm:$0xf]
    %v67 = vld [vmem:[%s2 + $0x9c] sm:$0x1]
    %v68 = vld [vmem:[%s2 + $0xa0] sm:$0xf]
    %v69 = vld [vmem:[%s2 + $0xa4] sm:$0xf]
    %v70 = vld [vmem:[%s2 + $0xa8] sm:$0xf]
    %v71 = vld [vmem:[%s2 + $0xac] sm:$0xf]
    %v72 = vld [vmem:[%s2 + $0xb0] sm:$0x1]
    %v73 = vld [vmem:[%s2 + $0xb4] sm:$0xf]
    %v74 = vld [vmem:[%s2 + $0xb8] sm:$0xf]
    %v75 = vld [vmem:[%s2 + $0xbc] sm:$0xf]
    %v76 = vld [vmem:[%s2 + $0xc0] sm:$0xf]
    %v77 = vld [vmem:[%s2 + $0xc4] sm:$0x1]
    %v78 = vld [vmem:[%s2 + $0xc8] sm:$0xf]
    %v79 = vld [vmem:[%s2 + $0xcc] sm:$0xf]
    %v80 = vld [vmem:[%s2 + $0xd0] sm:$0xf]
    %v81 = vld [vmem:[%s2 + $0xd4] sm:$0xf]
    %v82 = vld [vmem:[%s2 + $0xd8] sm:$0x1]
    %v83 = vld [vmem:[%s2 + $0xdc] sm:$0xf]
    %v84 = vld [vmem:[%s2 + $0xe0] sm:$0xf]
    %v85 = vld [vmem:[%s2 + $0xe4] sm:$0xf]
    %v86 = vld [vmem:[%s2 + $0xe8] sm:$0xf]
    %v87 = vld [vmem:[%s2 + $0xec] sm:$0x1]
    %v88 = vld [vmem:[%s2 + $0xf0] sm:$0xf]
    %v89 = vld [vmem:[%s2 + $0xf4] sm:$0xf]
    %v90 = vld [vmem:[%s2 + $0xf8] sm:$0xf]
    %v91 = vld [vmem:[%s2 + $0xfc] sm:$0xf]
    %v92 = vld [vmem:[%s2 + $0x100] sm:$0x1]
    %v93 = vld [vmem:[%s2 + $0x104] sm:$0xf]
    %v94 = vld [vmem:[%s2 + $0x108] sm:$0xf]
    %v95 = vld [vmem:[%s2 + $0x10c] sm:$0xf]
    %v96 = vld [vmem:[%s2 + $0x110] sm:$0xf]
    %v97 = vld [vmem:[%s2 + $0x114] sm:$0x1]
    %v98 = vld [vmem:[%s2 + $0x118] sm:$0xf]
    %v99 = vld [vmem:[%s2 + $0x11c] sm:$0xf]
    %v100 = vld [vmem:[%s2 + $0x120] sm:$0xf]
    %v101 = vld [vmem:[%s2 + $0x124] sm:$0xf]
    %v102 = vld [vmem:[%s2 + $0x128] sm:$0x1]
    %v103 = vld [vmem:[%s2 + $0x12c] sm:$0xf]
    %v104 = vld [vmem:[%s2 + $0x130] sm:$0xf]
    %v105 = vld [vmem:[%s2 + $0x134] sm:$0xf]
    %v106 = vld [vmem:[%s2 + $0x138] sm:$0xf]
    %v107 = vld [vmem:[%s2 + $0x13c] sm:$0x1]
    %v108 = vld [vmem:[%s2 + $0x140] sm:$0xf]
    %v109 = vld [vmem:[%s2 + $0x144] sm:$0xf]
    %v110 = vld [vmem:[%s2 + $0x148] sm:$0xf]
    %v111 = vld [vmem:[%s2 + $0x14c] sm:$0xf]
    %v112 = vld [vmem:[%s2 + $0x150] sm:$0x1]
    %v113 = vld [vmem:[%s2 + $0x154] sm:$0xf]
    %v114 = vld [vmem:[%s2 + $0x158] sm:$0xf]
    %v115 = vld [vmem:[%s2 + $0x15c] sm:$0xf]
    %v116 = vld [vmem:[%s2 + $0x160] sm:$0xf]
    %v117 = vld [vmem:[%s2 + $0x164] sm:$0x1]
    %v118 = vld [vmem:[%s2 + $0x168] sm:$0xf]
    %v119 = vld [vmem:[%s2 + $0x16c] sm:$0xf]
    %v120 = vld [vmem:[%s2 + $0x170] sm:$0xf]
    %v121 = vld [vmem:[%s2 + $0x174] sm:$0xf]
    %v122 = vld [vmem:[%s2 + $0x178] sm:$0x1]
    %v123 = vld [vmem:[%s2 + $0x17c] sm:$0xf]
    %v124 = vld [vmem:[%s2 + $0x180] sm:$0xf]
    %v125 = vld [vmem:[%s2 + $0x184] sm:$0xf]
    %v126 = vld [vmem:[%s2 + $0x188] sm:$0xf]
    %v127 = vld [vmem:[%s2 + $0x18c] sm:$0x1]
    %v128 = vld [vmem:[%s2 + $0x190] sm:$0xf]
    %v129 = vld [vmem:[%s2 + $0x194] sm:$0xf]
    %v130 = vld [vmem:[%s2 + $0x198] sm:$0xf]
    %v131 = vld [vmem:[%s2 + $0x19c] sm:$0xf]
    %v132 = vld [vmem:[%s2 + $0x1a0] sm:$0x1]
    %v133 = vld [vmem:[%s2 + $0x1a4] sm:$0xf]
    %v134 = vld [vmem:[%s2 + $0x1a8] sm:$0xf]
    %v135 = vld [vmem:[%s2 + $0x1ac] sm:$0xf]
    %v136 = vld [vmem:[%s2 + $0x1b0] sm:$0xf]
    %v137 = vld [vmem:[%s2 + $0x1b4] sm:$0x1]
    %v138 = vld [vmem:[%s2 + $0x1b8] sm:$0xf]
    %v139 = vld [vmem:[%s2 + $0x1bc] sm:$0xf]
    %v140 = vld [vmem:[%s2 + $0x1c0] sm:$0xf]
    %v141 = vld [vmem:[%s2 + $0x1c4] sm:$0xf]
    %v142 = vld [vmem:[%s2 + $0x1c8] sm:$0x1]
    %v143 = vld [vmem:[%s2 + $0x1cc] sm:$0xf]
    %v144 = vld [vmem:[%s2 + $0x1d0] sm:$0xf]
    %v145 = vld [vmem:[%s2 + $0x1d4] sm:$0xf]
    %v146 = vld [vmem:[%s2 + $0x1d8] sm:$0xf]
    %v147 = vld [vmem:[%s2 + $0x1dc] sm:$0x1]
    %v153 = vunpack.c.l.b16 %v28
    %v154 = vunpack.c.l.b16 %v29
    %v155 = vunpack.c.l.b16 %v30
    %v156 = vunpack.c.l.b16 %v31
    %v157 = vunpack.c.l.b16 %v32
    %v158 = vpack.c.b16 %v154, %v153
    %v159 = vpack.c.b16 %v156, %v155
    %v160 = vpack.c.b16 %v157, %v157
    %vm163 = vcmask 269312
    %v165 = vsel %vm163, %v22, 0
    %vm167 = vcmask 1040384
    %v168 = vsel 0, 4294967295, 65535
    %v169 = vsel %vm167, %v168, 0
    %v171 = vand.u32 %v160, %v169
    %173 = vmatpush.bf16.msra.mxu0 0
    %174 = vmatpush.bf16.msra.mxu0 0
    %175 = vmatpush.bf16.msra.mxu0 0
    %176 = vmatpush.bf16.msra.mxu0 0
    %177 = vmatpush.bf16.msra.mxu0 0
    %178 = vmatpush.bf16.msra.mxu0 %v171
    %179 = vmatpush.bf16.msra.mxu0 %v159
    %180 = vmatpush.bf16.msra.mxu0 %v158
    %181 = vmatmul.bf16.gmra.mxu0 %v165
    %v182 = vpop.f32.mrf.mxu0
    %v183 = vadd.f32 0.0, %v182
    %v184 = vpop.f32.mrf.mxu0
    %185 = vdwg.mxu0
    %v191 = vunpack.c.l.b16 %v33
    %v192 = vunpack.c.l.b16 %v34
    %v193 = vunpack.c.l.b16 %v35
    %v194 = vunpack.c.l.b16 %v36
    %v195 = vunpack.c.l.b16 %v37
    %v196 = vpack.c.b16 %v192, %v191
    %v197 = vpack.c.b16 %v194, %v193
    %v198 = vpack.c.b16 %v195, %v195
    %v202 = vand.u32 %v198, %v169
    %204 = vmatpush.bf16.msra.mxu0 0
    %205 = vmatpush.bf16.msra.mxu0 0
    %206 = vmatpush.bf16.msra.mxu0 0
    %207 = vmatpush.bf16.msra.mxu0 0
    %208 = vmatpush.bf16.msra.mxu0 0
    %209 = vmatpush.bf16.msra.mxu0 %v202
    %210 = vmatpush.bf16.msra.mxu0 %v197
    %211 = vmatpush.bf16.msra.mxu0 %v196
    %212 = vmatmul.bf16.gmra.mxu0 %v165
    %v213 = vpop.f32.mrf.mxu0
    %v214 = vadd.f32 0.0, %v213
    %v215 = vpop.f32.mrf.mxu0
    %216 = vdwg.mxu0
    %v222 = vunpack.c.l.b16 %v38
    %v223 = vunpack.c.l.b16 %v39
    %v224 = vunpack.c.l.b16 %v40
    %v225 = vunpack.c.l.b16 %v41
    %v226 = vunpack.c.l.b16 %v42
    %v227 = vpack.c.b16 %v223, %v222
    %v228 = vpack.c.b16 %v225, %v224
    %v229 = vpack.c.b16 %v226, %v226
    %v233 = vand.u32 %v229, %v169
    %235 = vmatpush.bf16.msra.mxu0 0
    %236 = vmatpush.bf16.msra.mxu0 0
    %237 = vmatpush.bf16.msra.mxu0 0
    %238 = vmatpush.bf16.msra.mxu0 0
    %239 = vmatpush.bf16.msra.mxu0 0
    %240 = vmatpush.bf16.msra.mxu0 %v233
    %241 = vmatpush.bf16.msra.mxu0 %v228
    %242 = vmatpush.bf16.msra.mxu0 %v227
    %243 = vmatmul.bf16.gmra.mxu0 %v165
    %v244 = vpop.f32.mrf.mxu0
    %v245 = vadd.f32 0.0, %v244
    %v246 = vpop.f32.mrf.mxu0
    %247 = vdwg.mxu0
    %v253 = vunpack.c.l.b16 %v43
    %v254 = vunpack.c.l.b16 %v44
    %v255 = vunpack.c.l.b16 %v45
    %v256 = vunpack.c.l.b16 %v46
    %v257 = vunpack.c.l.b16 %v47
    %v258 = vpack.c.b16 %v254, %v253
    %v259 = vpack.c.b16 %v256, %v255
    %v260 = vpack.c.b16 %v257, %v257
    %v264 = vand.u32 %v260, %v169
    %266 = vmatpush.bf16.msra.mxu0 0
    %267 = vmatpush.bf16.msra.mxu0 0
    %268 = vmatpush.bf16.msra.mxu0 0
    %269 = vmatpush.bf16.msra.mxu0 0
    %270 = vmatpush.bf16.msra.mxu0 0
    %271 = vmatpush.bf16.msra.mxu0 %v264
    %272 = vmatpush.bf16.msra.mxu0 %v259
    %273 = vmatpush.bf16.msra.mxu0 %v258
    %274 = vmatmul.bf16.gmra.mxu0 %v165
    %v275 = vpop.f32.mrf.mxu0
    %v276 = vadd.f32 0.0, %v275
    %v277 = vpop.f32.mrf.mxu0
    %278 = vdwg.mxu0
    %v284 = vunpack.c.l.b16 %v48
    %v285 = vunpack.c.l.b16 %v49
    %v286 = vunpack.c.l.b16 %v50
    %v287 = vunpack.c.l.b16 %v51
    %v288 = vunpack.c.l.b16 %v52
    %v289 = vpack.c.b16 %v285, %v284
    %v290 = vpack.c.b16 %v287, %v286
    %v291 = vpack.c.b16 %v288, %v288
    %v295 = vsel %vm163, %v23, 0
    %v298 = vand.u32 %v291, %v169
    %300 = vmatpush.bf16.msra.mxu0 0
    %301 = vmatpush.bf16.msra.mxu0 0
    %302 = vmatpush.bf16.msra.mxu0 0
    %303 = vmatpush.bf16.msra.mxu0 0
    %304 = vmatpush.bf16.msra.mxu0 0
    %305 = vmatpush.bf16.msra.mxu0 %v298
    %306 = vmatpush.bf16.msra.mxu0 %v290
    %307 = vmatpush.bf16.msra.mxu0 %v289
    %308 = vmatmul.bf16.gmra.mxu0 %v295
    %v309 = vpop.f32.mrf.mxu0
    %v310 = vadd.f32 0.0, %v309
    %v311 = vpop.f32.mrf.mxu0
    %312 = vdwg.mxu0
    %v318 = vunpack.c.l.b16 %v53
    %v319 = vunpack.c.l.b16 %v54
    %v320 = vunpack.c.l.b16 %v55
    %v321 = vunpack.c.l.b16 %v56
    %v322 = vunpack.c.l.b16 %v57
    %v323 = vpack.c.b16 %v319, %v318
    %v324 = vpack.c.b16 %v321, %v320
    %v325 = vpack.c.b16 %v322, %v322
    %v329 = vand.u32 %v325, %v169
    %331 = vmatpush.bf16.msra.mxu0 0
    %332 = vmatpush.bf16.msra.mxu0 0
    %333 = vmatpush.bf16.msra.mxu0 0
    %334 = vmatpush.bf16.msra.mxu0 0
    %335 = vmatpush.bf16.msra.mxu0 0
    %336 = vmatpush.bf16.msra.mxu0 %v329
    %337 = vmatpush.bf16.msra.mxu0 %v324
    %338 = vmatpush.bf16.msra.mxu0 %v323
    %339 = vmatmul.bf16.gmra.mxu0 %v295
    %v340 = vpop.f32.mrf.mxu0
    %v341 = vadd.f32 0.0, %v340
    %v342 = vpop.f32.mrf.mxu0
    %343 = vdwg.mxu0
    %v349 = vunpack.c.l.b16 %v58
    %v350 = vunpack.c.l.b16 %v59
    %v351 = vunpack.c.l.b16 %v60
    %v352 = vunpack.c.l.b16 %v61
    %v353 = vunpack.c.l.b16 %v62
    %v354 = vpack.c.b16 %v350, %v349
    %v355 = vpack.c.b16 %v352, %v351
    %v356 = vpack.c.b16 %v353, %v353
    %v360 = vand.u32 %v356, %v169
    %362 = vmatpush.bf16.msra.mxu0 0
    %363 = vmatpush.bf16.msra.mxu0 0
    %364 = vmatpush.bf16.msra.mxu0 0
    %365 = vmatpush.bf16.msra.mxu0 0
    %366 = vmatpush.bf16.msra.mxu0 0
    %367 = vmatpush.bf16.msra.mxu0 %v360
    %368 = vmatpush.bf16.msra.mxu0 %v355
    %369 = vmatpush.bf16.msra.mxu0 %v354
    %370 = vmatmul.bf16.gmra.mxu0 %v295
    %v371 = vpop.f32.mrf.mxu0
    %v372 = vadd.f32 0.0, %v371
    %v373 = vpop.f32.mrf.mxu0
    %374 = vdwg.mxu0
    %v380 = vunpack.c.l.b16 %v63
    %v381 = vunpack.c.l.b16 %v64
    %v382 = vunpack.c.l.b16 %v65
    %v383 = vunpack.c.l.b16 %v66
    %v384 = vunpack.c.l.b16 %v67
    %v385 = vpack.c.b16 %v381, %v380
    %v386 = vpack.c.b16 %v383, %v382
    %v387 = vpack.c.b16 %v384, %v384
    %v391 = vand.u32 %v387, %v169
    %393 = vmatpush.bf16.msra.mxu0 0
    %394 = vmatpush.bf16.msra.mxu0 0
    %395 = vmatpush.bf16.msra.mxu0 0
    %396 = vmatpush.bf16.msra.mxu0 0
    %397 = vmatpush.bf16.msra.mxu0 0
    %398 = vmatpush.bf16.msra.mxu0 %v391
    %399 = vmatpush.bf16.msra.mxu0 %v386
    %400 = vmatpush.bf16.msra.mxu0 %v385
    %401 = vmatmul.bf16.gmra.mxu0 %v295
    %v402 = vpop.f32.mrf.mxu0
    %v403 = vadd.f32 0.0, %v402
    %v404 = vpop.f32.mrf.mxu0
    %405 = vdwg.mxu0
    %v411 = vunpack.c.l.b16 %v68
    %v412 = vunpack.c.l.b16 %v69
    %v413 = vunpack.c.l.b16 %v70
    %v414 = vunpack.c.l.b16 %v71
    %v415 = vunpack.c.l.b16 %v72
    %v416 = vpack.c.b16 %v412, %v411
    %v417 = vpack.c.b16 %v414, %v413
    %v418 = vpack.c.b16 %v415, %v415
    %v422 = vsel %vm163, %v24, 0
    %v425 = vand.u32 %v418, %v169
    %427 = vmatpush.bf16.msra.mxu0 0
    %428 = vmatpush.bf16.msra.mxu0 0
    %429 = vmatpush.bf16.msra.mxu0 0
    %430 = vmatpush.bf16.msra.mxu0 0
    %431 = vmatpush.bf16.msra.mxu0 0
    %432 = vmatpush.bf16.msra.mxu0 %v425
    %433 = vmatpush.bf16.msra.mxu0 %v417
    %434 = vmatpush.bf16.msra.mxu0 %v416
    %435 = vmatmul.bf16.gmra.mxu0 %v422
    %v436 = vpop.f32.mrf.mxu0
    %v437 = vadd.f32 0.0, %v436
    %v438 = vpop.f32.mrf.mxu0
    %439 = vdwg.mxu0
    %v445 = vunpack.c.l.b16 %v73
    %v446 = vunpack.c.l.b16 %v74
    %v447 = vunpack.c.l.b16 %v75
    %v448 = vunpack.c.l.b16 %v76
    %v449 = vunpack.c.l.b16 %v77
    %v450 = vpack.c.b16 %v446, %v445
    %v451 = vpack.c.b16 %v448, %v447
    %v452 = vpack.c.b16 %v449, %v449
    %v456 = vand.u32 %v452, %v169
    %458 = vmatpush.bf16.msra.mxu0 0
    %459 = vmatpush.bf16.msra.mxu0 0
    %460 = vmatpush.bf16.msra.mxu0 0
    %461 = vmatpush.bf16.msra.mxu0 0
    %462 = vmatpush.bf16.msra.mxu0 0
    %463 = vmatpush.bf16.msra.mxu0 %v456
    %464 = vmatpush.bf16.msra.mxu0 %v451
    %465 = vmatpush.bf16.msra.mxu0 %v450
    %466 = vmatmul.bf16.gmra.mxu0 %v422
    %v467 = vpop.f32.mrf.mxu0
    %v468 = vadd.f32 0.0, %v467
    %v469 = vpop.f32.mrf.mxu0
    %470 = vdwg.mxu0
    %v476 = vunpack.c.l.b16 %v78
    %v477 = vunpack.c.l.b16 %v79
    %v478 = vunpack.c.l.b16 %v80
    %v479 = vunpack.c.l.b16 %v81
    %v480 = vunpack.c.l.b16 %v82
    %v481 = vpack.c.b16 %v477, %v476
    %v482 = vpack.c.b16 %v479, %v478
    %v483 = vpack.c.b16 %v480, %v480
    %v487 = vand.u32 %v483, %v169
    %489 = vmatpush.bf16.msra.mxu0 0
    %490 = vmatpush.bf16.msra.mxu0 0
    %491 = vmatpush.bf16.msra.mxu0 0
    %492 = vmatpush.bf16.msra.mxu0 0
    %493 = vmatpush.bf16.msra.mxu0 0
    %494 = vmatpush.bf16.msra.mxu0 %v487
    %495 = vmatpush.bf16.msra.mxu0 %v482
    %496 = vmatpush.bf16.msra.mxu0 %v481
    %497 = vmatmul.bf16.gmra.mxu0 %v422
    %v498 = vpop.f32.mrf.mxu0
    %v499 = vadd.f32 0.0, %v498
    %v500 = vpop.f32.mrf.mxu0
    %501 = vdwg.mxu0
    %v507 = vunpack.c.l.b16 %v83
    %v508 = vunpack.c.l.b16 %v84
    %v509 = vunpack.c.l.b16 %v85
    %v510 = vunpack.c.l.b16 %v86
    %v511 = vunpack.c.l.b16 %v87
    %v512 = vpack.c.b16 %v508, %v507
    %v513 = vpack.c.b16 %v510, %v509
    %v514 = vpack.c.b16 %v511, %v511
    %v518 = vand.u32 %v514, %v169
    %520 = vmatpush.bf16.msra.mxu0 0
    %521 = vmatpush.bf16.msra.mxu0 0
    %522 = vmatpush.bf16.msra.mxu0 0
    %523 = vmatpush.bf16.msra.mxu0 0
    %524 = vmatpush.bf16.msra.mxu0 0
    %525 = vmatpush.bf16.msra.mxu0 %v518
    %526 = vmatpush.bf16.msra.mxu0 %v513
    %527 = vmatpush.bf16.msra.mxu0 %v512
    %528 = vmatmul.bf16.gmra.mxu0 %v422
    %v529 = vpop.f32.mrf.mxu0
    %v530 = vadd.f32 0.0, %v529
    %v531 = vpop.f32.mrf.mxu0
    %532 = vdwg.mxu0
    %v538 = vunpack.c.l.b16 %v88
    %v539 = vunpack.c.l.b16 %v89
    %v540 = vunpack.c.l.b16 %v90
    %v541 = vunpack.c.l.b16 %v91
    %v542 = vunpack.c.l.b16 %v92
    %v543 = vpack.c.b16 %v539, %v538
    %v544 = vpack.c.b16 %v541, %v540
    %v545 = vpack.c.b16 %v542, %v542
    %v549 = vsel %vm163, %v25, 0
    %v552 = vand.u32 %v545, %v169
    %554 = vmatpush.bf16.msra.mxu0 0
    %555 = vmatpush.bf16.msra.mxu0 0
    %556 = vmatpush.bf16.msra.mxu0 0
    %557 = vmatpush.bf16.msra.mxu0 0
    %558 = vmatpush.bf16.msra.mxu0 0
    %559 = vmatpush.bf16.msra.mxu0 %v552
    %560 = vmatpush.bf16.msra.mxu0 %v544
    %561 = vmatpush.bf16.msra.mxu0 %v543
    %562 = vmatmul.bf16.gmra.mxu0 %v549
    %v563 = vpop.f32.mrf.mxu0
    %v564 = vadd.f32 0.0, %v563
    %v565 = vpop.f32.mrf.mxu0
    %566 = vdwg.mxu0
    %v572 = vunpack.c.l.b16 %v93
    %v573 = vunpack.c.l.b16 %v94
    %v574 = vunpack.c.l.b16 %v95
    %v575 = vunpack.c.l.b16 %v96
    %v576 = vunpack.c.l.b16 %v97
    %v577 = vpack.c.b16 %v573, %v572
    %v578 = vpack.c.b16 %v575, %v574
    %v579 = vpack.c.b16 %v576, %v576
    %v583 = vand.u32 %v579, %v169
    %585 = vmatpush.bf16.msra.mxu0 0
    %586 = vmatpush.bf16.msra.mxu0 0
    %587 = vmatpush.bf16.msra.mxu0 0
    %588 = vmatpush.bf16.msra.mxu0 0
    %589 = vmatpush.bf16.msra.mxu0 0
    %590 = vmatpush.bf16.msra.mxu0 %v583
    %591 = vmatpush.bf16.msra.mxu0 %v578
    %592 = vmatpush.bf16.msra.mxu0 %v577
    %593 = vmatmul.bf16.gmra.mxu0 %v549
    %v594 = vpop.f32.mrf.mxu0
    %v595 = vadd.f32 0.0, %v594
    %v596 = vpop.f32.mrf.mxu0
    %597 = vdwg.mxu0
    %v603 = vunpack.c.l.b16 %v98
    %v604 = vunpack.c.l.b16 %v99
    %v605 = vunpack.c.l.b16 %v100
    %v606 = vunpack.c.l.b16 %v101
    %v607 = vunpack.c.l.b16 %v102
    %v608 = vpack.c.b16 %v604, %v603
    %v609 = vpack.c.b16 %v606, %v605
    %v610 = vpack.c.b16 %v607, %v607
    %v614 = vand.u32 %v610, %v169
    %616 = vmatpush.bf16.msra.mxu0 0
    %617 = vmatpush.bf16.msra.mxu0 0
    %618 = vmatpush.bf16.msra.mxu0 0
    %619 = vmatpush.bf16.msra.mxu0 0
    %620 = vmatpush.bf16.msra.mxu0 0
    %621 = vmatpush.bf16.msra.mxu0 %v614
    %622 = vmatpush.bf16.msra.mxu0 %v609
    %623 = vmatpush.bf16.msra.mxu0 %v608
    %624 = vmatmul.bf16.gmra.mxu0 %v549
    %v625 = vpop.f32.mrf.mxu0
    %v626 = vadd.f32 0.0, %v625
    %v627 = vpop.f32.mrf.mxu0
    %628 = vdwg.mxu0
    %v634 = vunpack.c.l.b16 %v103
    %v635 = vunpack.c.l.b16 %v104
    %v636 = vunpack.c.l.b16 %v105
    %v637 = vunpack.c.l.b16 %v106
    %v638 = vunpack.c.l.b16 %v107
    %v639 = vpack.c.b16 %v635, %v634
    %v640 = vpack.c.b16 %v637, %v636
    %v641 = vpack.c.b16 %v638, %v638
    %v645 = vand.u32 %v641, %v169
    %647 = vmatpush.bf16.msra.mxu0 0
    %648 = vmatpush.bf16.msra.mxu0 0
    %649 = vmatpush.bf16.msra.mxu0 0
    %650 = vmatpush.bf16.msra.mxu0 0
    %651 = vmatpush.bf16.msra.mxu0 0
    %652 = vmatpush.bf16.msra.mxu0 %v645
    %653 = vmatpush.bf16.msra.mxu0 %v640
    %654 = vmatpush.bf16.msra.mxu0 %v639
    %655 = vmatmul.bf16.gmra.mxu0 %v549
    %v656 = vpop.f32.mrf.mxu0
    %v657 = vadd.f32 0.0, %v656
    %v658 = vpop.f32.mrf.mxu0
    %659 = vdwg.mxu0
    %v665 = vunpack.c.l.b16 %v108
    %v666 = vunpack.c.l.b16 %v109
    %v667 = vunpack.c.l.b16 %v110
    %v668 = vunpack.c.l.b16 %v111
    %v669 = vunpack.c.l.b16 %v112
    %v670 = vpack.c.b16 %v666, %v665
    %v671 = vpack.c.b16 %v668, %v667
    %v672 = vpack.c.b16 %v669, %v669
    %v676 = vsel %vm163, %v26, 0
    %v679 = vand.u32 %v672, %v169
    %681 = vmatpush.bf16.msra.mxu0 0
    %682 = vmatpush.bf16.msra.mxu0 0
    %683 = vmatpush.bf16.msra.mxu0 0
    %684 = vmatpush.bf16.msra.mxu0 0
    %685 = vmatpush.bf16.msra.mxu0 0
    %686 = vmatpush.bf16.msra.mxu0 %v679
    %687 = vmatpush.bf16.msra.mxu0 %v671
    %688 = vmatpush.bf16.msra.mxu0 %v670
    %689 = vmatmul.bf16.gmra.mxu0 %v676
    %v690 = vpop.f32.mrf.mxu0
    %v691 = vadd.f32 0.0, %v690
    %v692 = vpop.f32.mrf.mxu0
    %693 = vdwg.mxu0
    %v699 = vunpack.c.l.b16 %v113
    %v700 = vunpack.c.l.b16 %v114
    %v701 = vunpack.c.l.b16 %v115
    %v702 = vunpack.c.l.b16 %v116
    %v703 = vunpack.c.l.b16 %v117
    %v704 = vpack.c.b16 %v700, %v699
    %v705 = vpack.c.b16 %v702, %v701
    %v706 = vpack.c.b16 %v703, %v703
    %v710 = vand.u32 %v706, %v169
    %712 = vmatpush.bf16.msra.mxu0 0
    %713 = vmatpush.bf16.msra.mxu0 0
    %714 = vmatpush.bf16.msra.mxu0 0
    %715 = vmatpush.bf16.msra.mxu0 0
    %716 = vmatpush.bf16.msra.mxu0 0
    %717 = vmatpush.bf16.msra.mxu0 %v710
    %718 = vmatpush.bf16.msra.mxu0 %v705
    %719 = vmatpush.bf16.msra.mxu0 %v704
    %720 = vmatmul.bf16.gmra.mxu0 %v676
    %v721 = vpop.f32.mrf.mxu0
    %v722 = vadd.f32 0.0, %v721
    %v723 = vpop.f32.mrf.mxu0
    %724 = vdwg.mxu0
    %v730 = vunpack.c.l.b16 %v118
    %v731 = vunpack.c.l.b16 %v119
    %v732 = vunpack.c.l.b16 %v120
    %v733 = vunpack.c.l.b16 %v121
    %v734 = vunpack.c.l.b16 %v122
    %v735 = vpack.c.b16 %v731, %v730
    %v736 = vpack.c.b16 %v733, %v732
    %v737 = vpack.c.b16 %v734, %v734
    %v741 = vand.u32 %v737, %v169
    %743 = vmatpush.bf16.msra.mxu0 0
    %744 = vmatpush.bf16.msra.mxu0 0
    %745 = vmatpush.bf16.msra.mxu0 0
    %746 = vmatpush.bf16.msra.mxu0 0
    %747 = vmatpush.bf16.msra.mxu0 0
    %748 = vmatpush.bf16.msra.mxu0 %v741
    %749 = vmatpush.bf16.msra.mxu0 %v736
    %750 = vmatpush.bf16.msra.mxu0 %v735
    %751 = vmatmul.bf16.gmra.mxu0 %v676
    %v752 = vpop.f32.mrf.mxu0
    %v753 = vadd.f32 0.0, %v752
    %v754 = vpop.f32.mrf.mxu0
    %755 = vdwg.mxu0
    %v761 = vunpack.c.l.b16 %v123
    %v762 = vunpack.c.l.b16 %v124
    %v763 = vunpack.c.l.b16 %v125
    %v764 = vunpack.c.l.b16 %v126
    %v765 = vunpack.c.l.b16 %v127
    %v766 = vpack.c.b16 %v762, %v761
    %v767 = vpack.c.b16 %v764, %v763
    %v768 = vpack.c.b16 %v765, %v765
    %v772 = vand.u32 %v768, %v169
    %774 = vmatpush.bf16.msra.mxu0 0
    %775 = vmatpush.bf16.msra.mxu0 0
    %776 = vmatpush.bf16.msra.mxu0 0
    %777 = vmatpush.bf16.msra.mxu0 0
    %778 = vmatpush.bf16.msra.mxu0 0
    %779 = vmatpush.bf16.msra.mxu0 %v772
    %780 = vmatpush.bf16.msra.mxu0 %v767
    %781 = vmatpush.bf16.msra.mxu0 %v766
    %782 = vmatmul.bf16.gmra.mxu0 %v676
    %v783 = vpop.f32.mrf.mxu0
    %v784 = vadd.f32 0.0, %v783
    %v785 = vpop.f32.mrf.mxu0
    %786 = vdwg.mxu0
    %v792 = vunpack.c.l.b16 %v128
    %v793 = vunpack.c.l.b16 %v129
    %v794 = vunpack.c.l.b16 %v130
    %v795 = vunpack.c.l.b16 %v131
    %v796 = vunpack.c.l.b16 %v132
    %v797 = vpack.c.b16 %v793, %v792
    %v798 = vpack.c.b16 %v795, %v794
    %v799 = vpack.c.b16 %v796, %v796
    %v803 = vsel %vm163, %v27, 0
    %v806 = vand.u32 %v799, %v169
    %808 = vmatpush.bf16.msra.mxu0 0
    %809 = vmatpush.bf16.msra.mxu0 0
    %810 = vmatpush.bf16.msra.mxu0 0
    %811 = vmatpush.bf16.msra.mxu0 0
    %812 = vmatpush.bf16.msra.mxu0 0
    %813 = vmatpush.bf16.msra.mxu0 %v806
    %814 = vmatpush.bf16.msra.mxu0 %v798
    %815 = vmatpush.bf16.msra.mxu0 %v797
    %816 = vmatmul.bf16.gmra.mxu0 %v803
    %v817 = vpop.f32.mrf.mxu0
    %v818 = vadd.f32 0.0, %v817
    %v819 = vpop.f32.mrf.mxu0
    %820 = vdwg.mxu0
    %v826 = vunpack.c.l.b16 %v133
    %v827 = vunpack.c.l.b16 %v134
    %v828 = vunpack.c.l.b16 %v135
    %v829 = vunpack.c.l.b16 %v136
    %v830 = vunpack.c.l.b16 %v137
    %v831 = vpack.c.b16 %v827, %v826
    %v832 = vpack.c.b16 %v829, %v828
    %v833 = vpack.c.b16 %v830, %v830
    %v837 = vand.u32 %v833, %v169
    %839 = vmatpush.bf16.msra.mxu0 0
    %840 = vmatpush.bf16.msra.mxu0 0
    %841 = vmatpush.bf16.msra.mxu0 0
    %842 = vmatpush.bf16.msra.mxu0 0
    %843 = vmatpush.bf16.msra.mxu0 0
    %844 = vmatpush.bf16.msra.mxu0 %v837
    %845 = vmatpush.bf16.msra.mxu0 %v832
    %846 = vmatpush.bf16.msra.mxu0 %v831
    %847 = vmatmul.bf16.gmra.mxu0 %v803
    %v848 = vpop.f32.mrf.mxu0
    %v849 = vadd.f32 0.0, %v848
    %v850 = vpop.f32.mrf.mxu0
    %851 = vdwg.mxu0
    %v857 = vunpack.c.l.b16 %v138
    %v858 = vunpack.c.l.b16 %v139
    %v859 = vunpack.c.l.b16 %v140
    %v860 = vunpack.c.l.b16 %v141
    %v861 = vunpack.c.l.b16 %v142
    %v862 = vpack.c.b16 %v858, %v857
    %v863 = vpack.c.b16 %v860, %v859
    %v864 = vpack.c.b16 %v861, %v861
    %v868 = vand.u32 %v864, %v169
    %870 = vmatpush.bf16.msra.mxu0 0
    %871 = vmatpush.bf16.msra.mxu0 0
    %872 = vmatpush.bf16.msra.mxu0 0
    %873 = vmatpush.bf16.msra.mxu0 0
    %874 = vmatpush.bf16.msra.mxu0 0
    %875 = vmatpush.bf16.msra.mxu0 %v868
    %876 = vmatpush.bf16.msra.mxu0 %v863
    %877 = vmatpush.bf16.msra.mxu0 %v862
    %878 = vmatmul.bf16.gmra.mxu0 %v803
    %v879 = vpop.f32.mrf.mxu0
    %v880 = vadd.f32 0.0, %v879
    %v881 = vpop.f32.mrf.mxu0
    %882 = vdwg.mxu0
    %v888 = vunpack.c.l.b16 %v143
    %v889 = vunpack.c.l.b16 %v144
    %v890 = vunpack.c.l.b16 %v145
    %v891 = vunpack.c.l.b16 %v146
    %v892 = vunpack.c.l.b16 %v147
    %v893 = vpack.c.b16 %v889, %v888
    %v894 = vpack.c.b16 %v891, %v890
    %v895 = vpack.c.b16 %v892, %v892
    %v899 = vand.u32 %v895, %v169
    %901 = vmatpush.bf16.msra.mxu0 0
    %902 = vmatpush.bf16.msra.mxu0 0
    %903 = vmatpush.bf16.msra.mxu0 0
    %904 = vmatpush.bf16.msra.mxu0 0
    %905 = vmatpush.bf16.msra.mxu0 0
    %906 = vmatpush.bf16.msra.mxu0 %v899
    %907 = vmatpush.bf16.msra.mxu0 %v894
    %908 = vmatpush.bf16.msra.mxu0 %v893
    %909 = vmatmul.bf16.gmra.mxu0 %v803
    %v910 = vpop.f32.mrf.mxu0
    %v911 = vadd.f32 0.0, %v910
    %v912 = vpop.f32.mrf.mxu0
    %913 = vdwg.mxu0
    %v914 = vpack.c.bf16 %v183, %v183
    %v915 = vpack.c.bf16 %v214, %v214
    %v916 = vpack.c.bf16 %v245, %v245
    %v917 = vpack.c.bf16 %v276, %v276
    %v918 = vpack.c.bf16 %v310, %v310
    %v919 = vpack.c.bf16 %v341, %v341
    %v920 = vpack.c.bf16 %v372, %v372
    %v921 = vpack.c.bf16 %v403, %v403
    %v922 = vpack.c.bf16 %v437, %v437
    %v923 = vpack.c.bf16 %v468, %v468
    %v924 = vpack.c.bf16 %v499, %v499
    %v925 = vpack.c.bf16 %v530, %v530
    %v926 = vpack.c.bf16 %v564, %v564
    %v927 = vpack.c.bf16 %v595, %v595
    %v928 = vpack.c.bf16 %v626, %v626
    %v929 = vpack.c.bf16 %v657, %v657
    %v930 = vpack.c.bf16 %v691, %v691
    %v931 = vpack.c.bf16 %v722, %v722
    %v932 = vpack.c.bf16 %v753, %v753
    %v933 = vpack.c.bf16 %v784, %v784
    %v934 = vpack.c.bf16 %v818, %v818
    %v935 = vpack.c.bf16 %v849, %v849
    %v936 = vpack.c.bf16 %v880, %v880
    %v937 = vpack.c.bf16 %v911, %v911
    %vm938 = vcmask 64512
    %v940 = vsel %vm938, %v914, 0
    %v943 = vsel %vm938, %v922, 0
    %945 = vmatpush.bf16.xpose.msra.mxu0 0
    %946 = vmatpush.bf16.xpose.msra.mxu0 0
    %947 = vmatpush.bf16.xpose.msra.mxu0 0
    %948 = vmatpush.bf16.xpose.msra.mxu0 0
    %949 = vmatpush.bf16.xpose.msra.mxu0 0
    %950 = vmatpush.bf16.xpose.msra.mxu0 0
    %951 = vmatpush.bf16.xpose.msra.mxu0 0
    %952 = vmatpush.bf16.xpose.msra.mxu0 %v943
    %953 = vmatmul.bf16.gmra.mxu0 %v940
    %v954 = vpop.f32.mrf.mxu0
    %v955 = vadd.f32 0.0, %v954
    %v956 = vpop.f32.mrf.mxu0
    %957 = vdwg.mxu0
    %v959 = vsel %vm938, %v915, 0
    %v962 = vsel %vm938, %v923, 0
    %964 = vmatpush.bf16.xpose.msra.mxu0 0
    %965 = vmatpush.bf16.xpose.msra.mxu0 0
    %966 = vmatpush.bf16.xpose.msra.mxu0 0
    %967 = vmatpush.bf16.xpose.msra.mxu0 0
    %968 = vmatpush.bf16.xpose.msra.mxu0 0
    %969 = vmatpush.bf16.xpose.msra.mxu0 0
    %970 = vmatpush.bf16.xpose.msra.mxu0 0
    %971 = vmatpush.bf16.xpose.msra.mxu0 %v962
    %972 = vmatmul.bf16.gmra.mxu0 %v959
    %v973 = vpop.f32.mrf.mxu0
    %v974 = vadd.f32 0.0, %v973
    %v975 = vpop.f32.mrf.mxu0
    %976 = vdwg.mxu0
    %v978 = vsel %vm938, %v916, 0
    %v981 = vsel %vm938, %v924, 0
    %983 = vmatpush.bf16.xpose.msra.mxu0 0
    %984 = vmatpush.bf16.xpose.msra.mxu0 0
    %985 = vmatpush.bf16.xpose.msra.mxu0 0
    %986 = vmatpush.bf16.xpose.msra.mxu0 0
    %987 = vmatpush.bf16.xpose.msra.mxu0 0
    %988 = vmatpush.bf16.xpose.msra.mxu0 0
    %989 = vmatpush.bf16.xpose.msra.mxu0 0
    %990 = vmatpush.bf16.xpose.msra.mxu0 %v981
    %991 = vmatmul.bf16.gmra.mxu0 %v978
    %v992 = vpop.f32.mrf.mxu0
    %v993 = vadd.f32 0.0, %v992
    %v994 = vpop.f32.mrf.mxu0
    %995 = vdwg.mxu0
    %v997 = vsel %vm938, %v917, 0
    %v1000 = vsel %vm938, %v925, 0
    %1002 = vmatpush.bf16.xpose.msra.mxu0 0
    %1003 = vmatpush.bf16.xpose.msra.mxu0 0
    %1004 = vmatpush.bf16.xpose.msra.mxu0 0
    %1005 = vmatpush.bf16.xpose.msra.mxu0 0
    %1006 = vmatpush.bf16.xpose.msra.mxu0 0
    %1007 = vmatpush.bf16.xpose.msra.mxu0 0
    %1008 = vmatpush.bf16.xpose.msra.mxu0 0
    %1009 = vmatpush.bf16.xpose.msra.mxu0 %v1000
    %1010 = vmatmul.bf16.gmra.mxu0 %v997
    %v1011 = vpop.f32.mrf.mxu0
    %v1012 = vadd.f32 0.0, %v1011
    %v1013 = vpop.f32.mrf.mxu0
    %1014 = vdwg.mxu0
    %v1016 = vsel %vm938, %v918, 0
    %v1019 = vsel %vm938, %v926, 0
    %1021 = vmatpush.bf16.xpose.msra.mxu0 0
    %1022 = vmatpush.bf16.xpose.msra.mxu0 0
    %1023 = vmatpush.bf16.xpose.msra.mxu0 0
    %1024 = vmatpush.bf16.xpose.msra.mxu0 0
    %1025 = vmatpush.bf16.xpose.msra.mxu0 0
    %1026 = vmatpush.bf16.xpose.msra.mxu0 0
    %1027 = vmatpush.bf16.xpose.msra.mxu0 0
    %1028 = vmatpush.bf16.xpose.msra.mxu0 %v1019
    %1029 = vmatmul.bf16.gmra.mxu0 %v1016
    %v1030 = vpop.f32.mrf.mxu0
    %v1031 = vadd.f32 0.0, %v1030
    %v1032 = vpop.f32.mrf.mxu0
    %1033 = vdwg.mxu0
    %v1035 = vsel %vm938, %v919, 0
    %v1038 = vsel %vm938, %v927, 0
    %1040 = vmatpush.bf16.xpose.msra.mxu0 0
    %1041 = vmatpush.bf16.xpose.msra.mxu0 0
    %1042 = vmatpush.bf16.xpose.msra.mxu0 0
    %1043 = vmatpush.bf16.xpose.msra.mxu0 0
    %1044 = vmatpush.bf16.xpose.msra.mxu0 0
    %1045 = vmatpush.bf16.xpose.msra.mxu0 0
    %1046 = vmatpush.bf16.xpose.msra.mxu0 0
    %1047 = vmatpush.bf16.xpose.msra.mxu0 %v1038
    %1048 = vmatmul.bf16.gmra.mxu0 %v1035
    %v1049 = vpop.f32.mrf.mxu0
    %v1050 = vadd.f32 0.0, %v1049
    %v1051 = vpop.f32.mrf.mxu0
    %1052 = vdwg.mxu0
    %v1054 = vsel %vm938, %v920, 0
    %v1057 = vsel %vm938, %v928, 0
    %1059 = vmatpush.bf16.xpose.msra.mxu0 0
    %1060 = vmatpush.bf16.xpose.msra.mxu0 0
    %1061 = vmatpush.bf16.xpose.msra.mxu0 0
    %1062 = vmatpush.bf16.xpose.msra.mxu0 0
    %1063 = vmatpush.bf16.xpose.msra.mxu0 0
    %1064 = vmatpush.bf16.xpose.msra.mxu0 0
    %1065 = vmatpush.bf16.xpose.msra.mxu0 0
    %1066 = vmatpush.bf16.xpose.msra.mxu0 %v1057
    %1067 = vmatmul.bf16.gmra.mxu0 %v1054
    %v1068 = vpop.f32.mrf.mxu0
    %v1069 = vadd.f32 0.0, %v1068
    %v1070 = vpop.f32.mrf.mxu0
    %1071 = vdwg.mxu0
    %v1073 = vsel %vm938, %v921, 0
    %v1076 = vsel %vm938, %v929, 0
    %1078 = vmatpush.bf16.xpose.msra.mxu0 0
    %1079 = vmatpush.bf16.xpose.msra.mxu0 0
    %1080 = vmatpush.bf16.xpose.msra.mxu0 0
    %1081 = vmatpush.bf16.xpose.msra.mxu0 0
    %1082 = vmatpush.bf16.xpose.msra.mxu0 0
    %1083 = vmatpush.bf16.xpose.msra.mxu0 0
    %1084 = vmatpush.bf16.xpose.msra.mxu0 0
    %1085 = vmatpush.bf16.xpose.msra.mxu0 %v1076
    %1086 = vmatmul.bf16.gmra.mxu0 %v1073
    %v1087 = vpop.f32.mrf.mxu0
    %v1088 = vadd.f32 0.0, %v1087
    %v1089 = vpop.f32.mrf.mxu0
    %1090 = vdwg.mxu0
    %v1091 = vmul.f32 %v955, 0.35355338
    %v1092 = vmul.f32 %v974, 0.35355338
    %v1093 = vmul.f32 %v993, 0.35355338
    %v1094 = vmul.f32 %v1012, 0.35355338
    %v1095 = vmul.f32 %v1031, 0.35355338
    %v1096 = vmul.f32 %v1050, 0.35355338
    %v1097 = vmul.f32 %v1069, 0.35355338
    %v1098 = vmul.f32 %v1088, 0.35355338
    %v1099 = vld [vmem:[%s1] sm:$0xff]
    %v1100 = vld [vmem:[%s1 + $0x8] sm:$0xff]
    %v1101 = vld [vmem:[%s1 + $0x10] sm:$0xff]
    %v1102 = vld [vmem:[%s1 + $0x18] sm:$0xff]
    %v1103 = vld [vmem:[%s1 + $0x20] sm:$0xff]
    %v1104 = vld [vmem:[%s1 + $0x28] sm:$0xff]
    %v1105 = vld [vmem:[%s1 + $0x30] sm:$0xff]
    %v1106 = vld [vmem:[%s1 + $0x38] sm:$0xff]
    %v1107 = vadd.f32 %v1091, %v1099
    %v1108 = vadd.f32 %v1092, %v1100
    %v1109 = vadd.f32 %v1093, %v1101
    %v1110 = vadd.f32 %v1094, %v1102
    %v1111 = vadd.f32 %v1095, %v1103
    %v1112 = vadd.f32 %v1096, %v1104
    %v1113 = vadd.f32 %v1097, %v1105
    %v1114 = vadd.f32 %v1098, %v1106
    %v1115 = vsel %vm938, %v1107, -inf
    %1116 = vmax.xlane.f32.xlu0 %v1115
    %v1117 = vpop.xlane.xlu0 %1116
    %v1118 = vsel %vm938, %v1108, -inf
    %1119 = vmax.xlane.f32.xlu0 %v1118
    %v1120 = vpop.xlane.xlu0 %1119
    %v1121 = vsel %vm938, %v1109, -inf
    %1122 = vmax.xlane.f32.xlu0 %v1121
    %v1123 = vpop.xlane.xlu0 %1122
    %v1124 = vsel %vm938, %v1110, -inf
    %1125 = vmax.xlane.f32.xlu0 %v1124
    %v1126 = vpop.xlane.xlu0 %1125
    %v1127 = vsel %vm938, %v1111, -inf
    %1128 = vmax.xlane.f32.xlu0 %v1127
    %v1129 = vpop.xlane.xlu0 %1128
    %v1130 = vsel %vm938, %v1112, -inf
    %1131 = vmax.xlane.f32.xlu0 %v1130
    %v1132 = vpop.xlane.xlu0 %1131
    %v1133 = vsel %vm938, %v1113, -inf
    %1134 = vmax.xlane.f32.xlu0 %v1133
    %v1135 = vpop.xlane.xlu0 %1134
    %v1136 = vsel %vm938, %v1114, -inf
    %1137 = vmax.xlane.f32.xlu0 %v1136
    %v1138 = vpop.xlane.xlu0 %1137
    %v1139 = vsub.f32 %v1107, %v1117
    %v1140 = vsub.f32 %v1108, %v1120
    %v1141 = vsub.f32 %v1109, %v1123
    %v1142 = vsub.f32 %v1110, %v1126
    %v1143 = vsub.f32 %v1111, %v1129
    %v1144 = vsub.f32 %v1112, %v1132
    %v1145 = vsub.f32 %v1113, %v1135
    %v1146 = vsub.f32 %v1114, %v1138
    %v1147 = vmul.f32 %v1139, 1.442695
    %v1148 = vpow.pop %v1147
    %v1149 = vmul.f32 %v1140, 1.442695
    %v1150 = vpow.pop %v1149
    %v1151 = vmul.f32 %v1141, 1.442695
    %v1152 = vpow.pop %v1151
    %v1153 = vmul.f32 %v1142, 1.442695
    %v1154 = vpow.pop %v1153
    %v1155 = vmul.f32 %v1143, 1.442695
    %v1156 = vpow.pop %v1155
    %v1157 = vmul.f32 %v1144, 1.442695
    %v1158 = vpow.pop %v1157
    %v1159 = vmul.f32 %v1145, 1.442695
    %v1160 = vpow.pop %v1159
    %v1161 = vmul.f32 %v1146, 1.442695
    %v1162 = vpow.pop %v1161
    %v1163 = vsel %vm938, %v1148, 0.0
    %1164 = vadd.xlane.f32.xlu0 %v1163
    %v1165 = vpop.xlane.xlu0 %1164
    %v1166 = vsel %vm938, %v1150, 0.0
    %1167 = vadd.xlane.f32.xlu0 %v1166
    %v1168 = vpop.xlane.xlu0 %1167
    %v1169 = vsel %vm938, %v1152, 0.0
    %1170 = vadd.xlane.f32.xlu0 %v1169
    %v1171 = vpop.xlane.xlu0 %1170
    %v1172 = vsel %vm938, %v1154, 0.0
    %1173 = vadd.xlane.f32.xlu0 %v1172
    %v1174 = vpop.xlane.xlu0 %1173
    %v1175 = vsel %vm938, %v1156, 0.0
    %1176 = vadd.xlane.f32.xlu0 %v1175
    %v1177 = vpop.xlane.xlu0 %1176
    %v1178 = vsel %vm938, %v1158, 0.0
    %1179 = vadd.xlane.f32.xlu0 %v1178
    %v1180 = vpop.xlane.xlu0 %1179
    %v1181 = vsel %vm938, %v1160, 0.0
    %1182 = vadd.xlane.f32.xlu0 %v1181
    %v1183 = vpop.xlane.xlu0 %1182
    %v1184 = vsel %vm938, %v1162, 0.0
    %1185 = vadd.xlane.f32.xlu0 %v1184
    %v1186 = vpop.xlane.xlu0 %1185
    %v1187 = vrcp.pop %v1165
    %v1188 = vrcp.pop %v1168
    %v1189 = vrcp.pop %v1171
    %v1190 = vrcp.pop %v1174
    %v1191 = vrcp.pop %v1177
    %v1192 = vrcp.pop %v1180
    %v1193 = vrcp.pop %v1183
    %v1194 = vrcp.pop %v1186
    %v1195 = vmul.f32 %v1148, %v1187
    %v1196 = vmul.f32 %v1150, %v1188
    %v1197 = vmul.f32 %v1152, %v1189
    %v1198 = vmul.f32 %v1154, %v1190
    %v1199 = vmul.f32 %v1156, %v1191
    %v1200 = vmul.f32 %v1158, %v1192
    %v1201 = vmul.f32 %v1160, %v1193
    %v1202 = vmul.f32 %v1162, %v1194
    %v1203 = vpack.c.bf16 %v1195, %v1195
    %v1204 = vpack.c.bf16 %v1196, %v1196
    %v1205 = vpack.c.bf16 %v1197, %v1197
    %v1206 = vpack.c.bf16 %v1198, %v1198
    %v1207 = vpack.c.bf16 %v1199, %v1199
    %v1208 = vpack.c.bf16 %v1200, %v1200
    %v1209 = vpack.c.bf16 %v1201, %v1201
    %v1210 = vpack.c.bf16 %v1202, %v1202
    %v1212 = vsel %vm938, %v1203, 0
    %vm1214 = vcmask 1043456
    %v1216 = vsel %vm1214, %v930, 0
    %1218 = vmatpush.bf16.msra.mxu0 0
    %1219 = vmatpush.bf16.msra.mxu0 0
    %1220 = vmatpush.bf16.msra.mxu0 0
    %1221 = vmatpush.bf16.msra.mxu0 0
    %1222 = vmatpush.bf16.msra.mxu0 0
    %1223 = vmatpush.bf16.msra.mxu0 0
    %1224 = vmatpush.bf16.msra.mxu0 0
    %1225 = vmatpush.bf16.msra.mxu0 %v1216
    %1226 = vmatmul.bf16.gmra.mxu0 %v1212
    %v1227 = vpop.f32.mrf.mxu0
    %v1228 = vadd.f32 0.0, %v1227
    %v1229 = vpop.f32.mrf.mxu0
    %1230 = vdwg.mxu0
    %v1232 = vsel %vm938, %v1204, 0
    %v1235 = vsel %vm1214, %v931, 0
    %1237 = vmatpush.bf16.msra.mxu0 0
    %1238 = vmatpush.bf16.msra.mxu0 0
    %1239 = vmatpush.bf16.msra.mxu0 0
    %1240 = vmatpush.bf16.msra.mxu0 0
    %1241 = vmatpush.bf16.msra.mxu0 0
    %1242 = vmatpush.bf16.msra.mxu0 0
    %1243 = vmatpush.bf16.msra.mxu0 0
    %1244 = vmatpush.bf16.msra.mxu0 %v1235
    %1245 = vmatmul.bf16.gmra.mxu0 %v1232
    %v1246 = vpop.f32.mrf.mxu0
    %v1247 = vadd.f32 0.0, %v1246
    %v1248 = vpop.f32.mrf.mxu0
    %1249 = vdwg.mxu0
    %v1251 = vsel %vm938, %v1205, 0
    %v1254 = vsel %vm1214, %v932, 0
    %1256 = vmatpush.bf16.msra.mxu0 0
    %1257 = vmatpush.bf16.msra.mxu0 0
    %1258 = vmatpush.bf16.msra.mxu0 0
    %1259 = vmatpush.bf16.msra.mxu0 0
    %1260 = vmatpush.bf16.msra.mxu0 0
    %1261 = vmatpush.bf16.msra.mxu0 0
    %1262 = vmatpush.bf16.msra.mxu0 0
    %1263 = vmatpush.bf16.msra.mxu0 %v1254
    %1264 = vmatmul.bf16.gmra.mxu0 %v1251
    %v1265 = vpop.f32.mrf.mxu0
    %v1266 = vadd.f32 0.0, %v1265
    %v1267 = vpop.f32.mrf.mxu0
    %1268 = vdwg.mxu0
    %v1270 = vsel %vm938, %v1206, 0
    %v1273 = vsel %vm1214, %v933, 0
    %1275 = vmatpush.bf16.msra.mxu0 0
    %1276 = vmatpush.bf16.msra.mxu0 0
    %1277 = vmatpush.bf16.msra.mxu0 0
    %1278 = vmatpush.bf16.msra.mxu0 0
    %1279 = vmatpush.bf16.msra.mxu0 0
    %1280 = vmatpush.bf16.msra.mxu0 0
    %1281 = vmatpush.bf16.msra.mxu0 0
    %1282 = vmatpush.bf16.msra.mxu0 %v1273
    %1283 = vmatmul.bf16.gmra.mxu0 %v1270
    %v1284 = vpop.f32.mrf.mxu0
    %v1285 = vadd.f32 0.0, %v1284
    %v1286 = vpop.f32.mrf.mxu0
    %1287 = vdwg.mxu0
    %v1289 = vsel %vm938, %v1207, 0
    %v1292 = vsel %vm1214, %v934, 0
    %1294 = vmatpush.bf16.msra.mxu0 0
    %1295 = vmatpush.bf16.msra.mxu0 0
    %1296 = vmatpush.bf16.msra.mxu0 0
    %1297 = vmatpush.bf16.msra.mxu0 0
    %1298 = vmatpush.bf16.msra.mxu0 0
    %1299 = vmatpush.bf16.msra.mxu0 0
    %1300 = vmatpush.bf16.msra.mxu0 0
    %1301 = vmatpush.bf16.msra.mxu0 %v1292
    %1302 = vmatmul.bf16.gmra.mxu0 %v1289
    %v1303 = vpop.f32.mrf.mxu0
    %v1304 = vadd.f32 0.0, %v1303
    %v1305 = vpop.f32.mrf.mxu0
    %1306 = vdwg.mxu0
    %v1308 = vsel %vm938, %v1208, 0
    %v1311 = vsel %vm1214, %v935, 0
    %1313 = vmatpush.bf16.msra.mxu0 0
    %1314 = vmatpush.bf16.msra.mxu0 0
    %1315 = vmatpush.bf16.msra.mxu0 0
    %1316 = vmatpush.bf16.msra.mxu0 0
    %1317 = vmatpush.bf16.msra.mxu0 0
    %1318 = vmatpush.bf16.msra.mxu0 0
    %1319 = vmatpush.bf16.msra.mxu0 0
    %1320 = vmatpush.bf16.msra.mxu0 %v1311
    %1321 = vmatmul.bf16.gmra.mxu0 %v1308
    %v1322 = vpop.f32.mrf.mxu0
    %v1323 = vadd.f32 0.0, %v1322
    %v1324 = vpop.f32.mrf.mxu0
    %1325 = vdwg.mxu0
    %v1327 = vsel %vm938, %v1209, 0
    %v1330 = vsel %vm1214, %v936, 0
    %1332 = vmatpush.bf16.msra.mxu0 0
    %1333 = vmatpush.bf16.msra.mxu0 0
    %1334 = vmatpush.bf16.msra.mxu0 0
    %1335 = vmatpush.bf16.msra.mxu0 0
    %1336 = vmatpush.bf16.msra.mxu0 0
    %1337 = vmatpush.bf16.msra.mxu0 0
    %1338 = vmatpush.bf16.msra.mxu0 0
    %1339 = vmatpush.bf16.msra.mxu0 %v1330
    %1340 = vmatmul.bf16.gmra.mxu0 %v1327
    %v1341 = vpop.f32.mrf.mxu0
    %v1342 = vadd.f32 0.0, %v1341
    %v1343 = vpop.f32.mrf.mxu0
    %1344 = vdwg.mxu0
    %v1346 = vsel %vm938, %v1210, 0
    %v1349 = vsel %vm1214, %v937, 0
    %1351 = vmatpush.bf16.msra.mxu0 0
    %1352 = vmatpush.bf16.msra.mxu0 0
    %1353 = vmatpush.bf16.msra.mxu0 0
    %1354 = vmatpush.bf16.msra.mxu0 0
    %1355 = vmatpush.bf16.msra.mxu0 0
    %1356 = vmatpush.bf16.msra.mxu0 0
    %1357 = vmatpush.bf16.msra.mxu0 0
    %1358 = vmatpush.bf16.msra.mxu0 %v1349
    %1359 = vmatmul.bf16.gmra.mxu0 %v1346
    %v1360 = vpop.f32.mrf.mxu0
    %v1361 = vadd.f32 0.0, %v1360
    %v1362 = vpop.f32.mrf.mxu0
    %1363 = vdwg.mxu0
    %v1364 = vpack.c.bf16 %v1228, %v1228
    %v1365 = vpack.c.bf16 %v1247, %v1247
    %v1366 = vpack.c.bf16 %v1266, %v1266
    %v1367 = vpack.c.bf16 %v1285, %v1285
    %v1368 = vpack.c.bf16 %v1304, %v1304
    %v1369 = vpack.c.bf16 %v1323, %v1323
    %v1370 = vpack.c.bf16 %v1342, %v1342
    %v1371 = vpack.c.bf16 %v1361, %v1361
    %v1372 = vld [vmem:[%s3] sm:$0xf]
    %v1373 = vld [vmem:[%s3 + $0x4] sm:$0xf]
    %v1374 = vld [vmem:[%s3 + $0x8] sm:$0xf]
    %v1375 = vld [vmem:[%s3 + $0xc] sm:$0xf]
    %v1376 = vld [vmem:[%s3 + $0x10] sm:$0xf]
    %v1377 = vld [vmem:[%s3 + $0x14] sm:$0xf]
    %v1378 = vld [vmem:[%s3 + $0x18] sm:$0xf]
    %v1379 = vld [vmem:[%s3 + $0x1c] sm:$0xf]
    %v1381 = vsel %vm938, %v1364, 0
    %v1384 = vsel %vm1214, %v1372, 0
    %1386 = vmatpush.bf16.msra.mxu0 0
    %1387 = vmatpush.bf16.msra.mxu0 0
    %1388 = vmatpush.bf16.msra.mxu0 0
    %1389 = vmatpush.bf16.msra.mxu0 0
    %1390 = vmatpush.bf16.msra.mxu0 0
    %1391 = vmatpush.bf16.msra.mxu0 0
    %1392 = vmatpush.bf16.msra.mxu0 0
    %1393 = vmatpush.bf16.msra.mxu0 %v1384
    %1394 = vmatmul.bf16.gmra.mxu0 %v1381
    %v1395 = vpop.f32.mrf.mxu0
    %v1396 = vadd.f32 0.0, %v1395
    %v1397 = vpop.f32.mrf.mxu0
    %1398 = vdwg.mxu0
    %v1400 = vsel %vm938, %v1365, 0
    %v1403 = vsel %vm1214, %v1373, 0
    %1405 = vmatpush.bf16.msra.mxu0 0
    %1406 = vmatpush.bf16.msra.mxu0 0
    %1407 = vmatpush.bf16.msra.mxu0 0
    %1408 = vmatpush.bf16.msra.mxu0 0
    %1409 = vmatpush.bf16.msra.mxu0 0
    %1410 = vmatpush.bf16.msra.mxu0 0
    %1411 = vmatpush.bf16.msra.mxu0 0
    %1412 = vmatpush.bf16.msra.mxu0 %v1403
    %1413 = vmatmul.bf16.gmra.mxu0 %v1400
    %v1414 = vpop.f32.mrf.mxu0
    %v1415 = vadd.f32 0.0, %v1414
    %v1416 = vpop.f32.mrf.mxu0
    %1417 = vdwg.mxu0
    %v1419 = vsel %vm938, %v1366, 0
    %v1422 = vsel %vm1214, %v1374, 0
    %1424 = vmatpush.bf16.msra.mxu0 0
    %1425 = vmatpush.bf16.msra.mxu0 0
    %1426 = vmatpush.bf16.msra.mxu0 0
    %1427 = vmatpush.bf16.msra.mxu0 0
    %1428 = vmatpush.bf16.msra.mxu0 0
    %1429 = vmatpush.bf16.msra.mxu0 0
    %1430 = vmatpush.bf16.msra.mxu0 0
    %1431 = vmatpush.bf16.msra.mxu0 %v1422
    %1432 = vmatmul.bf16.gmra.mxu0 %v1419
    %v1433 = vpop.f32.mrf.mxu0
    %v1434 = vadd.f32 0.0, %v1433
    %v1435 = vpop.f32.mrf.mxu0
    %1436 = vdwg.mxu0
    %v1438 = vsel %vm938, %v1367, 0
    %v1441 = vsel %vm1214, %v1375, 0
    %1443 = vmatpush.bf16.msra.mxu0 0
    %1444 = vmatpush.bf16.msra.mxu0 0
    %1445 = vmatpush.bf16.msra.mxu0 0
    %1446 = vmatpush.bf16.msra.mxu0 0
    %1447 = vmatpush.bf16.msra.mxu0 0
    %1448 = vmatpush.bf16.msra.mxu0 0
    %1449 = vmatpush.bf16.msra.mxu0 0
    %1450 = vmatpush.bf16.msra.mxu0 %v1441
    %1451 = vmatmul.bf16.gmra.mxu0 %v1438
    %v1452 = vpop.f32.mrf.mxu0
    %v1453 = vadd.f32 0.0, %v1452
    %v1454 = vpop.f32.mrf.mxu0
    %1455 = vdwg.mxu0
    %v1457 = vsel %vm938, %v1368, 0
    %v1460 = vsel %vm1214, %v1376, 0
    %1462 = vmatpush.bf16.msra.mxu0 0
    %1463 = vmatpush.bf16.msra.mxu0 0
    %1464 = vmatpush.bf16.msra.mxu0 0
    %1465 = vmatpush.bf16.msra.mxu0 0
    %1466 = vmatpush.bf16.msra.mxu0 0
    %1467 = vmatpush.bf16.msra.mxu0 0
    %1468 = vmatpush.bf16.msra.mxu0 0
    %1469 = vmatpush.bf16.msra.mxu0 %v1460
    %1470 = vmatmul.bf16.gmra.mxu0 %v1457
    %v1471 = vpop.f32.mrf.mxu0
    %v1472 = vadd.f32 0.0, %v1471
    %v1473 = vpop.f32.mrf.mxu0
    %1474 = vdwg.mxu0
    %v1476 = vsel %vm938, %v1369, 0
    %v1479 = vsel %vm1214, %v1377, 0
    %1481 = vmatpush.bf16.msra.mxu0 0
    %1482 = vmatpush.bf16.msra.mxu0 0
    %1483 = vmatpush.bf16.msra.mxu0 0
    %1484 = vmatpush.bf16.msra.mxu0 0
    %1485 = vmatpush.bf16.msra.mxu0 0
    %1486 = vmatpush.bf16.msra.mxu0 0
    %1487 = vmatpush.bf16.msra.mxu0 0
    %1488 = vmatpush.bf16.msra.mxu0 %v1479
    %1489 = vmatmul.bf16.gmra.mxu0 %v1476
    %v1490 = vpop.f32.mrf.mxu0
    %v1491 = vadd.f32 0.0, %v1490
    %v1492 = vpop.f32.mrf.mxu0
    %1493 = vdwg.mxu0
    %v1495 = vsel %vm938, %v1370, 0
    %v1498 = vsel %vm1214, %v1378, 0
    %1500 = vmatpush.bf16.msra.mxu0 0
    %1501 = vmatpush.bf16.msra.mxu0 0
    %1502 = vmatpush.bf16.msra.mxu0 0
    %1503 = vmatpush.bf16.msra.mxu0 0
    %1504 = vmatpush.bf16.msra.mxu0 0
    %1505 = vmatpush.bf16.msra.mxu0 0
    %1506 = vmatpush.bf16.msra.mxu0 0
    %1507 = vmatpush.bf16.msra.mxu0 %v1498
    %1508 = vmatmul.bf16.gmra.mxu0 %v1495
    %v1509 = vpop.f32.mrf.mxu0
    %v1510 = vadd.f32 0.0, %v1509
    %v1511 = vpop.f32.mrf.mxu0
    %1512 = vdwg.mxu0
    %v1514 = vsel %vm938, %v1371, 0
    %v1517 = vsel %vm1214, %v1379, 0
    %1519 = vmatpush.bf16.msra.mxu0 0
    %1520 = vmatpush.bf16.msra.mxu0 0
    %1521 = vmatpush.bf16.msra.mxu0 0
    %1522 = vmatpush.bf16.msra.mxu0 0
    %1523 = vmatpush.bf16.msra.mxu0 0
    %1524 = vmatpush.bf16.msra.mxu0 0
    %1525 = vmatpush.bf16.msra.mxu0 0
    %1526 = vmatpush.bf16.msra.mxu0 %v1517
    %1527 = vmatmul.bf16.gmra.mxu0 %v1514
    %v1528 = vpop.f32.mrf.mxu0
    %v1529 = vadd.f32 0.0, %v1528
    %v1530 = vpop.f32.mrf.mxu0
    %1531 = vdwg.mxu0
    %v1532 = vadd.f32 %v1396, %v1415
    %v1533 = vadd.f32 %v1472, %v1491
    %v1534 = vadd.f32 %v1532, %v1434
    %v1535 = vadd.f32 %v1533, %v1510
    %v1536 = vadd.f32 %v1534, %v1453
    %v1537 = vadd.f32 %v1535, %v1529
    %v1538 = vld [vmem:[%s4] sm:$0x1]
    %v1540 = vperm.slane %v1538, 0
    %v1542 = vadd.f32 %v1536, %v1540
    %v1543 = vadd.f32 %v1537, %v1540
    %vm1544 = vcmask 261120
    %1545 = vst.msk [vmem:[#allocation2] sm:$0xff] %vm1544, %v1542
    %1546 = vst.msk [vmem:[#allocation2 + $0x8] sm:$0xff] %vm1544, %v1543
    // Predicated region
    $region22: #{mha_forward.1} parent=1 // pred_check
      _
    $region23: #{mha_forward.1} parent=1 // pred_check_branch
      %1548 = sbr.rel (0) target = $region25
    $region24: #{mha_forward.1} parent=1 // pred_region
      %1550 = vsyncadd [#allocation3], 0
      %s1551 = sshll.u32 [#allocation2], 4
      %s1552 = int_to_ptr.vmem [resolvable:$true] %s1551
      %s1553 = sshll.u32 %s5, 4
      %s1554 = int_to_ptr.hbm [resolvable:$true] %s1553
      %1559 = dma.vmem_to_hbm [thread:$0]  %s1552, 256, %s1554, [#allocation3], 128, 128, 8
    $region25: #{mha_forward.1} parent=1 // pred_fallthru
      _
    // Predicated region
    $region26: #{mha_forward.1} parent=1 // pred_check
      _
    $region27: #{mha_forward.1} parent=1 // pred_check_branch
      %1561 = sbr.rel (0) target = $region29
    $region28: #{mha_forward.1} parent=1 // pred_region
      %1563 = dma.done [#allocation3], 256
    $region29: #{mha_forward.1} parent=1 // pred_fallthru
      _
    %1564 = vsyncpa [#allocation3], 1

</llo_original>
